<compile_context>
chip_gen: v6e
topology: v6e:2x2x1
jax: 0.10.0
libtpu: 0.0.40
codegen_flags: <defaults>
</compile_context>

<pallas_src>
import jax
import jax.numpy as jnp
from jax.experimental import pallas as pl
from jax.experimental.pallas import tpu as pltpu


def _round_up(x, m):
    return ((x + m - 1) // m) * m


def _critic_tail(h, b1_ref, w2_ref, b2_ref, wl_ref, bl_ref, out_ref):
    """h: (H1, tb) f32 layer-1 matmul accumulation (feature-major)."""
    h = jnp.maximum(h + b1_ref[...], 0.0)                       # bias+ReLU in f32 (lane-dense VPU)
    h = jnp.dot(w2_ref[...], h.astype(w2_ref.dtype),
                preferred_element_type=jnp.float32)             # (H2, tb)
    h = jnp.maximum(h + b2_ref[...], 0.0)
    v = jnp.dot(wl_ref[...], h.astype(wl_ref.dtype),
                preferred_element_type=jnp.float32)             # (1, tb) direct lane-dense head
    out_ref[...] = (v + bl_ref[...]).astype(out_ref.dtype)


def _critic_kernel_obs_act(obs_ref, act_ref, w1o_ref, w1a_ref, b1_ref,
                           w2_ref, b2_ref, wl_ref, bl_ref, out_ref):
    # Layer 1: fused concat -> two matmuls accumulated in f32 (feature-major).
    h = jnp.dot(w1o_ref[...], obs_ref[...], preferred_element_type=jnp.float32)
    h = h + jnp.dot(w1a_ref[...], act_ref[...], preferred_element_type=jnp.float32)
    _critic_tail(h, b1_ref, w2_ref, b2_ref, wl_ref, bl_ref, out_ref)


def _critic_kernel_obs_only(obs_ref, w1o_ref, b1_ref,
                            w2_ref, b2_ref, wl_ref, bl_ref, out_ref):
    h = jnp.dot(w1o_ref[...], obs_ref[...], preferred_element_type=jnp.float32)
    _critic_tail(h, b1_ref, w2_ref, b2_ref, wl_ref, bl_ref, out_ref)


def critic_forward(obs, actions, params, *, block_batch=4096, use_bf16=True):
    """obs: [B, obs_dim]; actions: [B, ...] (flattened over dims >= 1) or None.

    params = (w1, b1, w2, b2, wl, bl) with weights stored [in_dim, out_dim]
    (the pure-JAX reference layout); they are transposed once here to the
    feature-major (out, in) layout the kernel consumes.
    """
    w1, b1, w2, b2, wl, bl = params

    obs = jnp.asarray(obs, jnp.float32)
    B, obs_dim = obs.shape
    H1 = w1.shape[1]
    H2 = w2.shape[1]

    has_act = actions is not None
    if has_act:
        act = jnp.asarray(actions, jnp.float32).reshape(B, -1)
        act_dim = act.shape[1]
        assert w1.shape[0] == obs_dim + act_dim
    else:
        act_dim = 0
        assert w1.shape[0] == obs_dim

    # bf16 streaming by default: activations + weights bf16, f32 accumulation
    # and f32 bias/ReLU; use_bf16=False gives a reference-tight f32 path.
    stream_dtype = jnp.bfloat16 if use_bf16 else jnp.float32

    # VMEM-resident (out, in)-layout weights / (out, 1) biases.
    w1o_t = jnp.asarray(w1[:obs_dim, :].T, stream_dtype)        # (H1, obs_dim)
    w2_t = jnp.asarray(w2.T, stream_dtype)                      # (H2, H1)
    wl_t = jnp.asarray(wl.reshape(1, H2), stream_dtype)         # (1, H2)
    b1c = jnp.asarray(b1.reshape(H1, 1), jnp.float32)
    b2c = jnp.asarray(b2.reshape(H2, 1), jnp.float32)
    blc = jnp.asarray(bl.reshape(1, 1), jnp.float32)

    # Batch tile on the lane axis (multiple of 128): aim for >= 8 grid steps
    # (pipelining + both v7x TCs busy), >= 512 rows/step for overhead
    # amortization, capped by block_batch / the (rounded) batch itself.
    tb = _round_up(max(pl.cdiv(B, 8), 1), 128)
    tb = max(tb, 512)
    tb = min(tb, _round_up(block_batch, 128), _round_up(B, 128))
    b_pad = _round_up(B, tb)
    grid = (b_pad // tb,)

    # Feature-major activations: one producer-side copy (transpose fused with
    # the <= tb-1 column zero pad).  Upstream producers should emit [feat, B].
    obs_t = jnp.pad(obs.astype(stream_dtype).T, ((0, 0), (0, b_pad - B)))

    const = lambda i: (0, 0)
    stream = lambda i: (0, i)

    if has_act:
        w1a_t = jnp.asarray(w1[obs_dim:, :].T, stream_dtype)    # (H1, act_dim)
        act_t = jnp.pad(act.astype(stream_dtype).T, ((0, 0), (0, b_pad - B)))
        kernel = _critic_kernel_obs_act
        inputs = [obs_t, act_t, w1o_t, w1a_t, b1c, w2_t, b2c, wl_t, blc]
        in_specs = [
            pl.BlockSpec((obs_dim, tb), stream),                # obs^T (streamed)
            pl.BlockSpec((act_dim, tb), stream),                # act^T (streamed)
            pl.BlockSpec((H1, obs_dim), const),                 # W1 obs part
            pl.BlockSpec((H1, act_dim), const),                 # W1 act part
            pl.BlockSpec((H1, 1), const),                       # b1
            pl.BlockSpec((H2, H1), const),                      # W2
            pl.BlockSpec((H2, 1), const),                       # b2
            pl.BlockSpec((1, H2), const),                       # Wl row
            pl.BlockSpec((1, 1), const),                        # bl
        ]
    else:
        kernel = _critic_kernel_obs_only
        inputs = [obs_t, w1o_t, b1c, w2_t, b2c, wl_t, blc]
        in_specs = [
            pl.BlockSpec((obs_dim, tb), stream),
            pl.BlockSpec((H1, obs_dim), const),
            pl.BlockSpec((H1, 1), const),
            pl.BlockSpec((H2, H1), const),
            pl.BlockSpec((H2, 1), const),
            pl.BlockSpec((1, H2), const),
            pl.BlockSpec((1, 1), const),
        ]

    in_dim = obs_dim + act_dim
    itemsize = jnp.dtype(stream_dtype).itemsize
    cost = pl.CostEstimate(
        flops=2 * b_pad * (in_dim * H1 + H1 * H2 + H2),
        transcendentals=0,
        bytes_accessed=(b_pad * in_dim * itemsize               # streamed activations
                        + b_pad * 4                             # values out
                        + (in_dim * H1 + H1 * H2 + H2) * itemsize
                        + (H1 + H2 + 1) * 4),                   # weights/biases
    )

    out = pl.pallas_call(
        kernel,
        out_shape=jax.ShapeDtypeStruct((1, b_pad), jnp.float32),
        grid=grid,
        in_specs=in_specs,
        out_specs=pl.BlockSpec((1, tb), lambda i: (0, i)),      # lane-dense values
        compiler_params=pltpu.CompilerParams(
            dimension_semantics=("parallel",),
            vmem_limit_bytes=32 * 1024 * 1024),                 # ample on v5e/v6e/v7x; usage ~2.5 MiB
        cost_estimate=cost,
    )(*inputs)

    return out[0, :B].reshape(B, 1)


def init_params(key, input_dim, hidden_dims):
    """Deterministic synthetic parameters. Weights stored as [in_dim, out_dim]."""
    dims = [input_dim] + list(hidden_dims)
    params = []
    for din, dout in zip(dims[:-1], dims[1:]):
        kw, kb, key = jax.random.split(key, 3)
        w = jax.random.normal(kw, (din, dout), jnp.float32) * 0.1
        b = jax.random.normal(kb, (1, dout), jnp.float32) * 0.1
        params += [w, b]
    kw, kb, key = jax.random.split(key, 3)
    wl = jax.random.normal(kw, (dims[-1], 1), jnp.float32) * 0.1
    bl = jax.random.normal(kb, (1, 1), jnp.float32) * 0.1
    params += [wl, bl]
    return params


def reference_forward(obs, actions, params):
    """Pure-JAX reference mirroring the PyTorch forward."""
    w1, b1, w2, b2, wl, bl = params
    x = jnp.asarray(obs, jnp.float32)
    if actions is not None:
        a = jnp.asarray(actions, jnp.float32).reshape(x.shape[0], -1)
        x = jnp.concatenate([x, a], axis=1)
    h = jnp.maximum(x @ w1 + b1.reshape(1, -1), 0.0)
    h = jnp.maximum(h @ w2 + b2.reshape(1, -1), 0.0)
    return h @ wl + bl.reshape(1, 1)


if __name__ == "__main__":
    key = jax.random.PRNGKey(0)

    batch = 2
    obs_dim = 16
    act_dim = 8
    hidden_dims = (32, 32)

    k_obs, k_act, k_par, k_par2 = jax.random.split(key, 4)
    obs = jax.random.normal(k_obs, (batch, obs_dim), jnp.float32)
    actions = jax.random.normal(k_act, (batch, act_dim), jnp.float32)
    params = init_params(k_par, obs_dim + act_dim, hidden_dims)
    ref = reference_forward(obs, actions, params)

    # f32 streaming path: tight tolerance against the reference.
    v_f32 = jax.block_until_ready(critic_forward(obs, actions, params, use_bf16=False))
    assert v_f32.shape == (batch, 1)
    assert jnp.allclose(v_f32, ref, atol=1e-4, rtol=1e-4)

    # Default bf16-streaming path (f32 accumulation) -- looser tolerance.
    v_bf16 = jax.block_until_ready(critic_forward(obs, actions, params))
    assert v_bf16.shape == (batch, 1)
    assert jnp.allclose(v_bf16, ref, atol=5e-2, rtol=5e-2)

    # Multi-step grid + ragged batch (B not a multiple of the tile).
    big_b = 300
    k_o2, k_a2 = jax.random.split(k_obs)
    obs2 = jax.random.normal(k_o2, (big_b, obs_dim), jnp.float32)
    act2 = jax.random.normal(k_a2, (big_b, act_dim), jnp.float32)
    ref2 = reference_forward(obs2, act2, params)
    v2 = jax.block_until_ready(
        critic_forward(obs2, act2, params, block_batch=128, use_bf16=False))
    assert v2.shape == (big_b, 1)
    assert jnp.allclose(v2, ref2, atol=1e-4, rtol=1e-4)

    v2_bf16 = jax.block_until_ready(critic_forward(obs2, act2, params, block_batch=128))
    assert jnp.allclose(v2_bf16, ref2, atol=5e-2, rtol=5e-2)

    # Specialized actions=None path (Critic(input_dim=obs_dim)).
    params_obs = init_params(k_par2, obs_dim, hidden_dims)
    ref3 = reference_forward(obs2, None, params_obs)
    v3 = jax.block_until_ready(critic_forward(obs2, None, params_obs, use_bf16=False))
    assert v3.shape == (big_b, 1)
    assert jnp.allclose(v3, ref3, atol=1e-4, rtol=1e-4)

    print("KERNEL_OK")
</pallas_src>

<mosaic_0001>
module attributes {stable_mosaic.version = 11 : i64} {
  func.func @_critic_kernel_obs_act(%arg0: i32, %arg1: memref<16x128xf32, #tpu.memory_space<vmem>>, %arg2: memref<8x128xf32, #tpu.memory_space<vmem>>, %arg3: memref<32x16xf32, #tpu.memory_space<vmem>>, %arg4: memref<32x8xf32, #tpu.memory_space<vmem>>, %arg5: memref<32x1xf32, #tpu.memory_space<vmem>>, %arg6: memref<32x32xf32, #tpu.memory_space<vmem>>, %arg7: memref<32x1xf32, #tpu.memory_space<vmem>>, %arg8: memref<1x32xf32, #tpu.memory_space<vmem>>, %arg9: memref<1x1xf32, #tpu.memory_space<vmem>>, %arg10: memref<1x128xf32, #tpu.memory_space<vmem>>) attributes {dimension_semantics = [#tpu.dimension_semantics<parallel>], iteration_bounds = array<i64: 1>, scalar_prefetch = 0 : i64, scratch_operands = 0 : i64, tpu.core_type = #tpu.core_type<tc>, window_params = [{transform_indices = @transform_0, window_bounds = array<i64: 16, 128>}, {transform_indices = @transform_1, window_bounds = array<i64: 8, 128>}, {pipeline_mode = #tpu.pipeline_mode<synchronous>, transform_indices = @transform_2, window_bounds = array<i64: 32, 16>}, {pipeline_mode = #tpu.pipeline_mode<synchronous>, transform_indices = @transform_3, window_bounds = array<i64: 32, 8>}, {pipeline_mode = #tpu.pipeline_mode<synchronous>, transform_indices = @transform_4, window_bounds = array<i64: 32, 1>}, {pipeline_mode = #tpu.pipeline_mode<synchronous>, transform_indices = @transform_5, window_bounds = array<i64: 32, 32>}, {pipeline_mode = #tpu.pipeline_mode<synchronous>, transform_indices = @transform_6, window_bounds = array<i64: 32, 1>}, {pipeline_mode = #tpu.pipeline_mode<synchronous>, transform_indices = @transform_7, window_bounds = array<i64: 1, 32>}, {pipeline_mode = #tpu.pipeline_mode<synchronous>, transform_indices = @transform_8, window_bounds = array<i64: 1, 1>}, {transform_indices = @transform_9, window_bounds = array<i64: 1, 128>}]} {
    %c0 = arith.constant 0 : index
    %c0_0 = arith.constant 0 : index
    %0 = vector.load %arg3[%c0, %c0_0] : memref<32x16xf32, #tpu.memory_space<vmem>>, vector<32x16xf32>
    %c0_1 = arith.constant 0 : index
    %c0_2 = arith.constant 0 : index
    %1 = vector.load %arg1[%c0_1, %c0_2] : memref<16x128xf32, #tpu.memory_space<vmem>>, vector<16x128xf32>
    %cst = arith.constant dense<0.000000e+00> : vector<32x128xf32>
    %2 = tpu.matmul %0, %1, %cst {dimension_numbers = #tpu.dot_dimension_numbers<[1], [0], [0], [1], [0, 0, 1, 1], [], []>} : vector<32x16xf32>, vector<16x128xf32>, vector<32x128xf32> -> vector<32x128xf32>
    %c0_3 = arith.constant 0 : index
    %c0_4 = arith.constant 0 : index
    %3 = vector.load %arg4[%c0_3, %c0_4] : memref<32x8xf32, #tpu.memory_space<vmem>>, vector<32x8xf32>
    %c0_5 = arith.constant 0 : index
    %c0_6 = arith.constant 0 : index
    %4 = vector.load %arg2[%c0_5, %c0_6] : memref<8x128xf32, #tpu.memory_space<vmem>>, vector<8x128xf32>
    %cst_7 = arith.constant dense<0.000000e+00> : vector<32x128xf32>
    %5 = tpu.matmul %3, %4, %cst_7 {dimension_numbers = #tpu.dot_dimension_numbers<[1], [0], [0], [1], [0, 0, 1, 1], [], []>} : vector<32x8xf32>, vector<8x128xf32>, vector<32x128xf32> -> vector<32x128xf32>
    %6 = arith.addf %2, %5 : vector<32x128xf32>
    %c0_8 = arith.constant 0 : index
    %c0_9 = arith.constant 0 : index
    %7 = vector.load %arg5[%c0_8, %c0_9] : memref<32x1xf32, #tpu.memory_space<vmem>>, vector<32x1xf32>
    %8 = vector.broadcast %7 : vector<32x1xf32> to vector<32x128xf32>
    %9 = arith.addf %6, %8 : vector<32x128xf32>
    %cst_10 = arith.constant 0.000000e+00 : f32
    %10 = vector.broadcast %cst_10 : f32 to vector<32x128xf32>
    %11 = arith.maximumf %9, %10 : vector<32x128xf32>
    %c0_11 = arith.constant 0 : index
    %c0_12 = arith.constant 0 : index
    %12 = vector.load %arg6[%c0_11, %c0_12] : memref<32x32xf32, #tpu.memory_space<vmem>>, vector<32x32xf32>
    %cst_13 = arith.constant dense<0.000000e+00> : vector<32x128xf32>
    %13 = tpu.matmul %12, %11, %cst_13 {dimension_numbers = #tpu.dot_dimension_numbers<[1], [0], [0], [1], [0, 0, 1, 1], [], []>} : vector<32x32xf32>, vector<32x128xf32>, vector<32x128xf32> -> vector<32x128xf32>
    %c0_14 = arith.constant 0 : index
    %c0_15 = arith.constant 0 : index
    %14 = vector.load %arg7[%c0_14, %c0_15] : memref<32x1xf32, #tpu.memory_space<vmem>>, vector<32x1xf32>
    %15 = vector.broadcast %14 : vector<32x1xf32> to vector<32x128xf32>
    %16 = arith.addf %13, %15 : vector<32x128xf32>
    %cst_16 = arith.constant 0.000000e+00 : f32
    %17 = vector.broadcast %cst_16 : f32 to vector<32x128xf32>
    %18 = arith.maximumf %16, %17 : vector<32x128xf32>
    %c0_17 = arith.constant 0 : index
    %c0_18 = arith.constant 0 : index
    %19 = vector.load %arg8[%c0_17, %c0_18] : memref<1x32xf32, #tpu.memory_space<vmem>>, vector<1x32xf32>
    %cst_19 = arith.constant dense<0.000000e+00> : vector<1x128xf32>
    %20 = tpu.matmul %19, %18, %cst_19 {dimension_numbers = #tpu.dot_dimension_numbers<[1], [0], [0], [1], [0, 0, 1, 1], [], []>} : vector<1x32xf32>, vector<32x128xf32>, vector<1x128xf32> -> vector<1x128xf32>
    %c0_20 = arith.constant 0 : index
    %c0_21 = arith.constant 0 : index
    %21 = vector.load %arg9[%c0_20, %c0_21] : memref<1x1xf32, #tpu.memory_space<vmem>>, vector<1x1xf32>
    %22 = vector.broadcast %21 : vector<1x1xf32> to vector<1x128xf32>
    %23 = arith.addf %20, %22 : vector<1x128xf32>
    %c0_22 = arith.constant 0 : index
    %c0_23 = arith.constant 0 : index
    %24 = vector.load %arg10[%c0_22, %c0_23] : memref<1x128xf32, #tpu.memory_space<vmem>>, vector<1x128xf32>
    tpu.vector_store %arg10[%c0_22, %c0_23], %23 {strides = array<i32>} : memref<1x128xf32, #tpu.memory_space<vmem>>, vector<1x128xf32>,
    return
  }
  func.func @transform_0(%arg0: i32) -> (i32, i32) {
    %c0_i32 = arith.constant 0 : i32
    %c0_i32_0 = arith.constant 0 : i32
    return %c0_i32, %arg0 : i32, i32
  }
  func.func @transform_1(%arg0: i32) -> (i32, i32) {
    %c0_i32 = arith.constant 0 : i32
    %c0_i32_0 = arith.constant 0 : i32
    return %c0_i32, %arg0 : i32, i32
  }
  func.func @transform_2(%arg0: i32) -> (i32, i32) {
    %c0_i32 = arith.constant 0 : i32
    %c0_i32_0 = arith.constant 0 : i32
    %c0_i32_1 = arith.constant 0 : i32
    return %c0_i32, %c0_i32_0 : i32, i32
  }
  func.func @transform_3(%arg0: i32) -> (i32, i32) {
    %c0_i32 = arith.constant 0 : i32
    %c0_i32_0 = arith.constant 0 : i32
    %c0_i32_1 = arith.constant 0 : i32
    return %c0_i32, %c0_i32_0 : i32, i32
  }
  func.func @transform_4(%arg0: i32) -> (i32, i32) {
    %c0_i32 = arith.constant 0 : i32
    %c0_i32_0 = arith.constant 0 : i32
    %c0_i32_1 = arith.constant 0 : i32
    return %c0_i32, %c0_i32_0 : i32, i32
  }
  func.func @transform_5(%arg0: i32) -> (i32, i32) {
    %c0_i32 = arith.constant 0 : i32
    %c0_i32_0 = arith.constant 0 : i32
    %c0_i32_1 = arith.constant 0 : i32
    return %c0_i32, %c0_i32_0 : i32, i32
  }
  func.func @transform_6(%arg0: i32) -> (i32, i32) {
    %c0_i32 = arith.constant 0 : i32
    %c0_i32_0 = arith.constant 0 : i32
    %c0_i32_1 = arith.constant 0 : i32
    return %c0_i32, %c0_i32_0 : i32, i32
  }
  func.func @transform_7(%arg0: i32) -> (i32, i32) {
    %c0_i32 = arith.constant 0 : i32
    %c0_i32_0 = arith.constant 0 : i32
    %c0_i32_1 = arith.constant 0 : i32
    return %c0_i32, %c0_i32_0 : i32, i32
  }
  func.func @transform_8(%arg0: i32) -> (i32, i32) {
    %c0_i32 = arith.constant 0 : i32
    %c0_i32_0 = arith.constant 0 : i32
    %c0_i32_1 = arith.constant 0 : i32
    return %c0_i32, %c0_i32_0 : i32, i32
  }
  func.func @transform_9(%arg0: i32) -> (i32, i32) {
    %c0_i32 = arith.constant 0 : i32
    %c0_i32_0 = arith.constant 0 : i32
    return %c0_i32, %arg0 : i32, i32
  }
}

</mosaic_0001>

<llo_original>
// kernel: tpu_custom_call.1
$region0: #{tpu_custom_call.1}
  #allocation0 [shape = 'u32[]', space=smem, size = 0x4, offset = 0x4, fixed_abs, tag = 'smem constant byte address 0x4 - core index']
  #allocation1 [shape = 'u32[144,128]{1,0:T(1,128)}', space=vmem, size = 0x12000, scoped, tag = 'internal scratch']
  #allocation2 [shape = 'f32[1,1]{1,0:T(1,128)S(1)}', space=vmem, size = 0x200, scoped, tag = 'scoped memory for tpu_custom_call.1']
  %s0 = inlined_call_operand.vmem [shape: f32[16,128], index: 0, kind: input, shape index: {}]
  %s1 = inlined_call_operand.vmem [shape: f32[8,128], index: 1, kind: input, shape index: {}]
  %s2 = inlined_call_operand.vmem [shape: f32[32,16], index: 2, kind: input, shape index: {}]
  %s3 = inlined_call_operand.vmem [shape: f32[32,8], index: 3, kind: input, shape index: {}]
  %s4 = inlined_call_operand.vmem [shape: f32[32,1], index: 4, kind: input, shape index: {}]
  %s5 = inlined_call_operand.vmem [shape: f32[32,32], index: 5, kind: input, shape index: {}]
  %s6 = inlined_call_operand.vmem [shape: f32[32,1], index: 6, kind: input, shape index: {}]
  %s7 = inlined_call_operand.vmem [shape: f32[1,32], index: 7, kind: input, shape index: {}]
  %s8 = inlined_call_operand.<no memory space> [shape: f32[1,1], index: 8, kind: input, shape index: {}]
  %s9 = inlined_call_operand.hbm [shape: f32[1,128], index: 9, kind: output, shape index: {}]
  %s10 = sld [smem:[#allocation0]]
  $region46: #{tpu_custom_call.1} parent=0
    _
  %s12 = ssub.s32 1, %s10
  %s13 = scalar_select 0, %s12, %s10
  %v14 = vstv %s8
  %15 = vst [vmem:[#allocation2] sm:$0x1] %v14
  $region1: #{tpu_custom_call.1} parent=0
    #allocation3 [shape = 'u8[512]{0}', space=vmem, size = 0x400, scoped, tag = 'output window, operand 0, single buffered']
    #allocation4 [shape = 's32[1]{0}', space=sflag, size = 0x4, scoped, tag = 'scoped memory for tpu_custom_call.1']
    %16 = vsyncpa [#allocation4], 0
    // Predicated region
    $region2: #{tpu_custom_call.1} parent=1 // pred_check
      _
    $region3: #{tpu_custom_call.1} parent=1 // pred_check_branch
      %18 = sbr.rel (0) target = $region5
    $region4: #{tpu_custom_call.1} parent=1 // pred_region
      _
    $region5: #{tpu_custom_call.1} parent=1 // pred_fallthru
      _
    // Predicated region
    $region6: #{tpu_custom_call.1} parent=1 // pred_check
      _
    $region7: #{tpu_custom_call.1} parent=1 // pred_check_branch
      %20 = sbr.rel (0) target = $region9
    $region8: #{tpu_custom_call.1} parent=1 // pred_region
      _
    $region9: #{tpu_custom_call.1} parent=1 // pred_fallthru
      _
    // Predicated region
    $region10: #{tpu_custom_call.1} parent=1 // pred_check
      _
    $region11: #{tpu_custom_call.1} parent=1 // pred_check_branch
      %22 = sbr.rel (0) target = $region13
    $region12: #{tpu_custom_call.1} parent=1 // pred_region
      _
    $region13: #{tpu_custom_call.1} parent=1 // pred_fallthru
      _
    // Predicated region
    $region14: #{tpu_custom_call.1} parent=1 // pred_check
      _
    $region15: #{tpu_custom_call.1} parent=1 // pred_check_branch
      %24 = sbr.rel (0) target = $region17
    $region16: #{tpu_custom_call.1} parent=1 // pred_region
      _
    $region17: #{tpu_custom_call.1} parent=1 // pred_fallthru
      _
    // Predicated region
    $region18: #{tpu_custom_call.1} parent=1 // pred_check
      _
    $region19: #{tpu_custom_call.1} parent=1 // pred_check_branch
      %26 = sbr.rel (0) target = $region21
    $region20: #{tpu_custom_call.1} parent=1 // pred_region
      _
    $region21: #{tpu_custom_call.1} parent=1 // pred_fallthru
      _
    // Predicated region
    $region22: #{tpu_custom_call.1} parent=1 // pred_check
      _
    $region23: #{tpu_custom_call.1} parent=1 // pred_check_branch
      %28 = sbr.rel (0) target = $region25
    $region24: #{tpu_custom_call.1} parent=1 // pred_region
      _
    $region25: #{tpu_custom_call.1} parent=1 // pred_fallthru
      _
    // Predicated region
    $region26: #{tpu_custom_call.1} parent=1 // pred_check
      _
    $region27: #{tpu_custom_call.1} parent=1 // pred_check_branch
      %30 = sbr.rel (0) target = $region29
    $region28: #{tpu_custom_call.1} parent=1 // pred_region
      _
    $region29: #{tpu_custom_call.1} parent=1 // pred_fallthru
      _
    // Predicated region
    $region30: #{tpu_custom_call.1} parent=1 // pred_check
      _
    $region31: #{tpu_custom_call.1} parent=1 // pred_check_branch
      %32 = sbr.rel (0) target = $region33
    $region32: #{tpu_custom_call.1} parent=1 // pred_region
      _
    $region33: #{tpu_custom_call.1} parent=1 // pred_fallthru
      _
    // Predicated region
    $region34: #{tpu_custom_call.1} parent=1 // pred_check
      _
    $region35: #{tpu_custom_call.1} parent=1 // pred_check_branch
      %34 = sbr.rel (0) target = $region37
    $region36: #{tpu_custom_call.1} parent=1 // pred_region
      _
    $region37: #{tpu_custom_call.1} parent=1 // pred_fallthru
      _
    %v35 = vld [vmem:[%s2] sm:$0xff]
    %v36 = vld [vmem:[%s2 + $0x8] sm:$0xff]
    %v37 = vld [vmem:[%s2 + $0x10] sm:$0xff]
    %v38 = vld [vmem:[%s2 + $0x18] sm:$0xff]
    %v39 = vld [vmem:[%s0] sm:$0xff]
    %v40 = vld [vmem:[%s0 + $0x8] sm:$0xff]
    %v41 = vld [vmem:[%s3] sm:$0xff]
    %v42 = vld [vmem:[%s3 + $0x8] sm:$0xff]
    %v43 = vld [vmem:[%s3 + $0x10] sm:$0xff]
    %v44 = vld [vmem:[%s3 + $0x18] sm:$0xff]
    %v45 = vld [vmem:[%s1] sm:$0xff]
    %vm46 = vcmask 64512
    %v48 = vsel %vm46, %v41, 0
    %v51 = vsel %vm46, %v42, 0
    %v54 = vsel %vm46, %v43, 0
    %v57 = vsel %vm46, %v44, 0
    %59 = vmatprep.subr.mxu0 0.0
    %60 = vmatpush1.msra.mxu0 0.0
    %61 = vmatprep.subr.mxu0 0.0
    %62 = vmatpush1.msra.mxu0 0.0
    %63 = vmatprep.subr.mxu0 0.0
    %64 = vmatpush1.msra.mxu0 0.0
    %65 = vmatprep.subr.mxu0 0.0
    %66 = vmatpush1.msra.mxu0 0.0
    %67 = vmatprep.subr.mxu0 0.0
    %68 = vmatpush1.msra.mxu0 0.0
    %69 = vmatprep.subr.mxu0 0.0
    %70 = vmatpush1.msra.mxu0 0.0
    %71 = vmatprep.subr.mxu0 0.0
    %72 = vmatpush1.msra.mxu0 0.0
    %73 = vmatprep.subr.mxu0 0.0
    %74 = vmatpush1.msra.mxu0 0.0
    %75 = vmatprep.subr.mxu0 0.0
    %76 = vmatpush1.msra.mxu0 0.0
    %77 = vmatprep.subr.mxu0 0.0
    %78 = vmatpush1.msra.mxu0 0.0
    %79 = vmatprep.subr.mxu0 0.0
    %80 = vmatpush1.msra.mxu0 0.0
    %81 = vmatprep.subr.mxu0 0.0
    %82 = vmatpush1.msra.mxu0 0.0
    %83 = vmatprep.subr.mxu0 0.0
    %84 = vmatpush1.msra.mxu0 0.0
    %85 = vmatprep.subr.mxu0 0.0
    %86 = vmatpush1.msra.mxu0 0.0
    %87 = vmatprep.subr.mxu0 0.0
    %88 = vmatpush1.msra.mxu0 0.0
    %89 = vmatprep.subr.mxu0 0.0
    %90 = vmatpush1.msra.mxu0 %v45
    %91 = vmatprep.subr.mxu0 0.0
    %92 = vmatpush2.msra.mxu0 0.0
    %93 = vmatprep.subr.mxu0 0.0
    %94 = vmatpush2.msra.mxu0 0.0
    %95 = vmatprep.subr.mxu0 0.0
    %96 = vmatpush2.msra.mxu0 0.0
    %97 = vmatprep.subr.mxu0 0.0
    %98 = vmatpush2.msra.mxu0 0.0
    %99 = vmatprep.subr.mxu0 0.0
    %100 = vmatpush2.msra.mxu0 0.0
    %101 = vmatprep.subr.mxu0 0.0
    %102 = vmatpush2.msra.mxu0 0.0
    %103 = vmatprep.subr.mxu0 0.0
    %104 = vmatpush2.msra.mxu0 0.0
    %105 = vmatprep.subr.mxu0 0.0
    %106 = vmatpush2.msra.mxu0 0.0
    %107 = vmatprep.subr.mxu0 0.0
    %108 = vmatpush2.msra.mxu0 0.0
    %109 = vmatprep.subr.mxu0 0.0
    %110 = vmatpush2.msra.mxu0 0.0
    %111 = vmatprep.subr.mxu0 0.0
    %112 = vmatpush2.msra.mxu0 0.0
    %113 = vmatprep.subr.mxu0 0.0
    %114 = vmatpush2.msra.mxu0 0.0
    %115 = vmatprep.subr.mxu0 0.0
    %116 = vmatpush2.msra.mxu0 0.0
    %117 = vmatprep.subr.mxu0 0.0
    %118 = vmatpush2.msra.mxu0 0.0
    %119 = vmatprep.subr.mxu0 0.0
    %120 = vmatpush2.msra.mxu0 0.0
    %121 = vmatprep.subr.mxu0 0.0
    %122 = vmatpush2.msra.mxu0 0.0
    %123 = vmatprep.mubr.f32.mxu0 0.0
    %124 = vmatmul.mubr.f32.gmra.mxu0 %v48
    %v125 = vpop.f32.mrf.mxu0
    %v126 = vadd.f32 0.0, %v125
    %v127 = vpop.f32.mrf.mxu0
    %128 = vmatprep.mubr.f32.mxu0 0.0
    %129 = vmatmul.mubr.f32.gmra.mxu0 %v51
    %v130 = vpop.f32.mrf.mxu0
    %v131 = vadd.f32 0.0, %v130
    %v132 = vpop.f32.mrf.mxu0
    %133 = vmatprep.mubr.f32.mxu0 0.0
    %134 = vmatmul.mubr.f32.gmra.mxu0 %v54
    %v135 = vpop.f32.mrf.mxu0
    %v136 = vadd.f32 0.0, %v135
    %v137 = vpop.f32.mrf.mxu0
    %138 = vmatprep.mubr.f32.mxu0 0.0
    %139 = vmatmul.mubr.f32.gmra.mxu0 %v57
    %v140 = vpop.f32.mrf.mxu0
    %v141 = vadd.f32 0.0, %v140
    %v142 = vpop.f32.mrf.mxu0
    %143 = vdwg.mxu0
    %vm144 = vcmask 130048
    %v146 = vsel %vm144, %v35, 0
    %v149 = vsel %vm144, %v36, 0
    %v152 = vsel %vm144, %v37, 0
    %v155 = vsel %vm144, %v38, 0
    %157 = vmatprep.subr.mxu0 0.0
    %158 = vmatpush1.msra.mxu0 0.0
    %159 = vmatprep.subr.mxu0 0.0
    %160 = vmatpush1.msra.mxu0 0.0
    %161 = vmatprep.subr.mxu0 0.0
    %162 = vmatpush1.msra.mxu0 0.0
    %163 = vmatprep.subr.mxu0 0.0
    %164 = vmatpush1.msra.mxu0 0.0
    %165 = vmatprep.subr.mxu0 0.0
    %166 = vmatpush1.msra.mxu0 0.0
    %167 = vmatprep.subr.mxu0 0.0
    %168 = vmatpush1.msra.mxu0 0.0
    %169 = vmatprep.subr.mxu0 0.0
    %170 = vmatpush1.msra.mxu0 0.0
    %171 = vmatprep.subr.mxu0 0.0
    %172 = vmatpush1.msra.mxu0 0.0
    %173 = vmatprep.subr.mxu0 0.0
    %174 = vmatpush1.msra.mxu0 0.0
    %175 = vmatprep.subr.mxu0 0.0
    %176 = vmatpush1.msra.mxu0 0.0
    %177 = vmatprep.subr.mxu0 0.0
    %178 = vmatpush1.msra.mxu0 0.0
    %179 = vmatprep.subr.mxu0 0.0
    %180 = vmatpush1.msra.mxu0 0.0
    %181 = vmatprep.subr.mxu0 0.0
    %182 = vmatpush1.msra.mxu0 0.0
    %183 = vmatprep.subr.mxu0 0.0
    %184 = vmatpush1.msra.mxu0 0.0
    %185 = vmatprep.subr.mxu0 0.0
    %186 = vmatpush1.msra.mxu0 %v40
    %187 = vmatprep.subr.mxu0 0.0
    %188 = vmatpush1.msra.mxu0 %v39
    %189 = vmatprep.subr.mxu0 0.0
    %190 = vmatpush2.msra.mxu0 0.0
    %191 = vmatprep.subr.mxu0 0.0
    %192 = vmatpush2.msra.mxu0 0.0
    %193 = vmatprep.subr.mxu0 0.0
    %194 = vmatpush2.msra.mxu0 0.0
    %195 = vmatprep.subr.mxu0 0.0
    %196 = vmatpush2.msra.mxu0 0.0
    %197 = vmatprep.subr.mxu0 0.0
    %198 = vmatpush2.msra.mxu0 0.0
    %199 = vmatprep.subr.mxu0 0.0
    %200 = vmatpush2.msra.mxu0 0.0
    %201 = vmatprep.subr.mxu0 0.0
    %202 = vmatpush2.msra.mxu0 0.0
    %203 = vmatprep.subr.mxu0 0.0
    %204 = vmatpush2.msra.mxu0 0.0
    %205 = vmatprep.subr.mxu0 0.0
    %206 = vmatpush2.msra.mxu0 0.0
    %207 = vmatprep.subr.mxu0 0.0
    %208 = vmatpush2.msra.mxu0 0.0
    %209 = vmatprep.subr.mxu0 0.0
    %210 = vmatpush2.msra.mxu0 0.0
    %211 = vmatprep.subr.mxu0 0.0
    %212 = vmatpush2.msra.mxu0 0.0
    %213 = vmatprep.subr.mxu0 0.0
    %214 = vmatpush2.msra.mxu0 0.0
    %215 = vmatprep.subr.mxu0 0.0
    %216 = vmatpush2.msra.mxu0 0.0
    %217 = vmatprep.subr.mxu0 0.0
    %218 = vmatpush2.msra.mxu0 0.0
    %219 = vmatprep.subr.mxu0 0.0
    %220 = vmatpush2.msra.mxu0 0.0
    %221 = vmatprep.mubr.f32.mxu0 0.0
    %222 = vmatmul.mubr.f32.gmra.mxu0 %v146
    %v223 = vpop.f32.mrf.mxu0
    %v224 = vadd.f32 %v126, %v223
    %v225 = vpop.f32.mrf.mxu0
    %226 = vmatprep.mubr.f32.mxu0 0.0
    %227 = vmatmul.mubr.f32.gmra.mxu0 %v149
    %v228 = vpop.f32.mrf.mxu0
    %v229 = vadd.f32 %v131, %v228
    %v230 = vpop.f32.mrf.mxu0
    %231 = vmatprep.mubr.f32.mxu0 0.0
    %232 = vmatmul.mubr.f32.gmra.mxu0 %v152
    %v233 = vpop.f32.mrf.mxu0
    %v234 = vadd.f32 %v136, %v233
    %v235 = vpop.f32.mrf.mxu0
    %236 = vmatprep.mubr.f32.mxu0 0.0
    %237 = vmatmul.mubr.f32.gmra.mxu0 %v155
    %v238 = vpop.f32.mrf.mxu0
    %v239 = vadd.f32 %v141, %v238
    %v240 = vpop.f32.mrf.mxu0
    %241 = vdwg.mxu0
    %v242 = vld [vmem:[%s4] sm:$0xff]
    %v243 = vld [vmem:[%s4 + $0x8] sm:$0xff]
    %v244 = vld [vmem:[%s4 + $0x10] sm:$0xff]
    %v245 = vld [vmem:[%s4 + $0x18] sm:$0xff]
    %247 = vset.pattern.permute.xlu0 0
    %248 = vperm.xlu0 %247, %v242
    %v249 = vpop.permute.xlu0 %248
    %252 = vset.pattern.permute.xlu0 0
    %253 = vperm.xlu0 %252, %v243
    %v254 = vpop.permute.xlu0 %253
    %257 = vset.pattern.permute.xlu0 0
    %258 = vperm.xlu0 %257, %v244
    %v259 = vpop.permute.xlu0 %258
    %262 = vset.pattern.permute.xlu0 0
    %263 = vperm.xlu0 %262, %v245
    %v264 = vpop.permute.xlu0 %263
    %v266 = vadd.f32 %v224, %v249
    %v267 = vadd.f32 %v229, %v254
    %v268 = vadd.f32 %v234, %v259
    %v269 = vadd.f32 %v239, %v264
    %v270 = vmax.f32 %v266, 0.0
    %v271 = vmax.f32 %v267, 0.0
    %v272 = vmax.f32 %v268, 0.0
    %v273 = vmax.f32 %v269, 0.0
    %v274 = vld [vmem:[%s5] sm:$0xff]
    %v275 = vld [vmem:[%s5 + $0x8] sm:$0xff]
    %v276 = vld [vmem:[%s5 + $0x10] sm:$0xff]
    %v277 = vld [vmem:[%s5 + $0x18] sm:$0xff]
    %v278 = vld [vmem:[%s6] sm:$0xff]
    %v279 = vld [vmem:[%s6 + $0x8] sm:$0xff]
    %v280 = vld [vmem:[%s6 + $0x10] sm:$0xff]
    %v281 = vld [vmem:[%s6 + $0x18] sm:$0xff]
    %283 = vset.pattern.permute.xlu0 0
    %284 = vperm.xlu0 %283, %v278
    %v285 = vpop.permute.xlu0 %284
    %288 = vset.pattern.permute.xlu0 0
    %289 = vperm.xlu0 %288, %v279
    %v290 = vpop.permute.xlu0 %289
    %293 = vset.pattern.permute.xlu0 0
    %294 = vperm.xlu0 %293, %v280
    %v295 = vpop.permute.xlu0 %294
    %298 = vset.pattern.permute.xlu0 0
    %299 = vperm.xlu0 %298, %v281
    %v300 = vpop.permute.xlu0 %299
    %vm302 = vcmask 261120
    %v304 = vsel %vm302, %v274, 0
    %v307 = vsel %vm302, %v275, 0
    %v310 = vsel %vm302, %v276, 0
    %v313 = vsel %vm302, %v277, 0
    %315 = vmatprep.subr.mxu0 0.0
    %316 = vmatpush1.msra.mxu0 0.0
    %317 = vmatprep.subr.mxu0 0.0
    %318 = vmatpush1.msra.mxu0 0.0
    %319 = vmatprep.subr.mxu0 0.0
    %320 = vmatpush1.msra.mxu0 0.0
    %321 = vmatprep.subr.mxu0 0.0
    %322 = vmatpush1.msra.mxu0 0.0
    %323 = vmatprep.subr.mxu0 0.0
    %324 = vmatpush1.msra.mxu0 0.0
    %325 = vmatprep.subr.mxu0 0.0
    %326 = vmatpush1.msra.mxu0 0.0
    %327 = vmatprep.subr.mxu0 0.0
    %328 = vmatpush1.msra.mxu0 0.0
    %329 = vmatprep.subr.mxu0 0.0
    %330 = vmatpush1.msra.mxu0 0.0
    %331 = vmatprep.subr.mxu0 0.0
    %332 = vmatpush1.msra.mxu0 0.0
    %333 = vmatprep.subr.mxu0 0.0
    %334 = vmatpush1.msra.mxu0 0.0
    %335 = vmatprep.subr.mxu0 0.0
    %336 = vmatpush1.msra.mxu0 0.0
    %337 = vmatprep.subr.mxu0 0.0
    %338 = vmatpush1.msra.mxu0 0.0
    %339 = vmatprep.subr.mxu0 0.0
    %340 = vmatpush1.msra.mxu0 %v273
    %341 = vmatprep.subr.mxu0 0.0
    %342 = vmatpush1.msra.mxu0 %v272
    %343 = vmatprep.subr.mxu0 0.0
    %344 = vmatpush1.msra.mxu0 %v271
    %345 = vmatprep.subr.mxu0 0.0
    %346 = vmatpush1.msra.mxu0 %v270
    %347 = vmatprep.subr.mxu0 0.0
    %348 = vmatpush2.msra.mxu0 0.0
    %349 = vmatprep.subr.mxu0 0.0
    %350 = vmatpush2.msra.mxu0 0.0
    %351 = vmatprep.subr.mxu0 0.0
    %352 = vmatpush2.msra.mxu0 0.0
    %353 = vmatprep.subr.mxu0 0.0
    %354 = vmatpush2.msra.mxu0 0.0
    %355 = vmatprep.subr.mxu0 0.0
    %356 = vmatpush2.msra.mxu0 0.0
    %357 = vmatprep.subr.mxu0 0.0
    %358 = vmatpush2.msra.mxu0 0.0
    %359 = vmatprep.subr.mxu0 0.0
    %360 = vmatpush2.msra.mxu0 0.0
    %361 = vmatprep.subr.mxu0 0.0
    %362 = vmatpush2.msra.mxu0 0.0
    %363 = vmatprep.subr.mxu0 0.0
    %364 = vmatpush2.msra.mxu0 0.0
    %365 = vmatprep.subr.mxu0 0.0
    %366 = vmatpush2.msra.mxu0 0.0
    %367 = vmatprep.subr.mxu0 0.0
    %368 = vmatpush2.msra.mxu0 0.0
    %369 = vmatprep.subr.mxu0 0.0
    %370 = vmatpush2.msra.mxu0 0.0
    %371 = vmatprep.subr.mxu0 0.0
    %372 = vmatpush2.msra.mxu0 0.0
    %373 = vmatprep.subr.mxu0 0.0
    %374 = vmatpush2.msra.mxu0 0.0
    %375 = vmatprep.subr.mxu0 0.0
    %376 = vmatpush2.msra.mxu0 0.0
    %377 = vmatprep.subr.mxu0 0.0
    %378 = vmatpush2.msra.mxu0 0.0
    %379 = vmatprep.mubr.f32.mxu0 0.0
    %380 = vmatmul.mubr.f32.gmra.mxu0 %v304
    %v381 = vpop.f32.mrf.mxu0
    %v382 = vadd.f32 %v285, %v381
    %v383 = vpop.f32.mrf.mxu0
    %384 = vmatprep.mubr.f32.mxu0 0.0
    %385 = vmatmul.mubr.f32.gmra.mxu0 %v307
    %v386 = vpop.f32.mrf.mxu0
    %v387 = vadd.f32 %v290, %v386
    %v388 = vpop.f32.mrf.mxu0
    %389 = vmatprep.mubr.f32.mxu0 0.0
    %390 = vmatmul.mubr.f32.gmra.mxu0 %v310
    %v391 = vpop.f32.mrf.mxu0
    %v392 = vadd.f32 %v295, %v391
    %v393 = vpop.f32.mrf.mxu0
    %394 = vmatprep.mubr.f32.mxu0 0.0
    %395 = vmatmul.mubr.f32.gmra.mxu0 %v313
    %v396 = vpop.f32.mrf.mxu0
    %v397 = vadd.f32 %v300, %v396
    %v398 = vpop.f32.mrf.mxu0
    %399 = vdwg.mxu0
    %v400 = vmax.f32 %v382, 0.0
    %v401 = vmax.f32 %v387, 0.0
    %v402 = vmax.f32 %v392, 0.0
    %v403 = vmax.f32 %v397, 0.0
    %v404 = vld [vmem:[%s7] sm:$0x1]
    %v405 = vld [vmem:[#allocation2] sm:$0x1]
    %407 = vset.pattern.permute.xlu0 0
    %408 = vperm.xlu0 %407, %v405
    %v409 = vpop.permute.xlu0 %408
    %v411 = vlaneseq
    %v412 = vshrl.u32 %v411, 7
    %v413 = vsub.s32 0, %v412
    %v414 = vrot.slane %v409, %v413
    %v416 = vsel %vm302, %v404, 0
    %418 = vmatprep.subr.mxu0 0.0
    %419 = vmatpush1.msra.mxu0 0.0
    %420 = vmatprep.subr.mxu0 0.0
    %421 = vmatpush1.msra.mxu0 0.0
    %422 = vmatprep.subr.mxu0 0.0
    %423 = vmatpush1.msra.mxu0 0.0
    %424 = vmatprep.subr.mxu0 0.0
    %425 = vmatpush1.msra.mxu0 0.0
    %426 = vmatprep.subr.mxu0 0.0
    %427 = vmatpush1.msra.mxu0 0.0
    %428 = vmatprep.subr.mxu0 0.0
    %429 = vmatpush1.msra.mxu0 0.0
    %430 = vmatprep.subr.mxu0 0.0
    %431 = vmatpush1.msra.mxu0 0.0
    %432 = vmatprep.subr.mxu0 0.0
    %433 = vmatpush1.msra.mxu0 0.0
    %434 = vmatprep.subr.mxu0 0.0
    %435 = vmatpush1.msra.mxu0 0.0
    %436 = vmatprep.subr.mxu0 0.0
    %437 = vmatpush1.msra.mxu0 0.0
    %438 = vmatprep.subr.mxu0 0.0
    %439 = vmatpush1.msra.mxu0 0.0
    %440 = vmatprep.subr.mxu0 0.0
    %441 = vmatpush1.msra.mxu0 0.0
    %442 = vmatprep.subr.mxu0 0.0
    %443 = vmatpush1.msra.mxu0 %v403
    %444 = vmatprep.subr.mxu0 0.0
    %445 = vmatpush1.msra.mxu0 %v402
    %446 = vmatprep.subr.mxu0 0.0
    %447 = vmatpush1.msra.mxu0 %v401
    %448 = vmatprep.subr.mxu0 0.0
    %449 = vmatpush1.msra.mxu0 %v400
    %450 = vmatprep.subr.mxu0 0.0
    %451 = vmatpush2.msra.mxu0 0.0
    %452 = vmatprep.subr.mxu0 0.0
    %453 = vmatpush2.msra.mxu0 0.0
    %454 = vmatprep.subr.mxu0 0.0
    %455 = vmatpush2.msra.mxu0 0.0
    %456 = vmatprep.subr.mxu0 0.0
    %457 = vmatpush2.msra.mxu0 0.0
    %458 = vmatprep.subr.mxu0 0.0
    %459 = vmatpush2.msra.mxu0 0.0
    %460 = vmatprep.subr.mxu0 0.0
    %461 = vmatpush2.msra.mxu0 0.0
    %462 = vmatprep.subr.mxu0 0.0
    %463 = vmatpush2.msra.mxu0 0.0
    %464 = vmatprep.subr.mxu0 0.0
    %465 = vmatpush2.msra.mxu0 0.0
    %466 = vmatprep.subr.mxu0 0.0
    %467 = vmatpush2.msra.mxu0 0.0
    %468 = vmatprep.subr.mxu0 0.0
    %469 = vmatpush2.msra.mxu0 0.0
    %470 = vmatprep.subr.mxu0 0.0
    %471 = vmatpush2.msra.mxu0 0.0
    %472 = vmatprep.subr.mxu0 0.0
    %473 = vmatpush2.msra.mxu0 0.0
    %474 = vmatprep.subr.mxu0 0.0
    %475 = vmatpush2.msra.mxu0 0.0
    %476 = vmatprep.subr.mxu0 0.0
    %477 = vmatpush2.msra.mxu0 0.0
    %478 = vmatprep.subr.mxu0 0.0
    %479 = vmatpush2.msra.mxu0 0.0
    %480 = vmatprep.subr.mxu0 0.0
    %481 = vmatpush2.msra.mxu0 0.0
    %482 = vmatprep.mubr.f32.mxu0 0.0
    %483 = vmatmul.mubr.f32.gmra.mxu0 %v416
    %v484 = vpop.f32.mrf.mxu0
    %v485 = vadd.f32 %v414, %v484
    %v486 = vpop.f32.mrf.mxu0
    %487 = vdwg.mxu0
    %488 = vst [vmem:[#allocation3] sm:$0x1] %v485
    // Predicated region
    $region38: #{tpu_custom_call.1} parent=1 // pred_check
      _
    $region39: #{tpu_custom_call.1} parent=1 // pred_check_branch
      %490 = sbr.rel (0) target = $region41
    $region40: #{tpu_custom_call.1} parent=1 // pred_region
      %s492 = ssub.s32 16, 16
      %493 = vsyncadd [#allocation4], %s492
      %s495 = sshll.u32 [#allocation3], 4
      %s496 = int_to_ptr.vmem [resolvable:$true] %s495
      %498 = dma.vmem_to_hbm [thread:$0]  %s496, 16, %s9, [#allocation4]
    $region41: #{tpu_custom_call.1} parent=1 // pred_fallthru
      _
    // Predicated region
    $region42: #{tpu_custom_call.1} parent=1 // pred_check
      _
    $region43: #{tpu_custom_call.1} parent=1 // pred_check_branch
      %500 = sbr.rel (0) target = $region45
    $region44: #{tpu_custom_call.1} parent=1 // pred_region
      %501 = dma.done [#allocation4], 16
    $region45: #{tpu_custom_call.1} parent=1 // pred_fallthru
      _
    %502 = vsyncpa [#allocation4], 1

</llo_original>
